<compile_context>
chip_gen: v6e
topology: v6e:2x2x1
jax: 0.10.0
libtpu: 0.0.40
codegen_flags: <defaults>
</compile_context>

<pallas_src>
import functools
import math

import jax
import jax.numpy as jnp
import numpy as np
from jax.experimental import pallas as pl
from jax.experimental.pallas import tpu as pltpu


def spectral_attention_kernel(x_ref, wq_ref, bq_ref, wk_ref, bk_ref, wv_ref, bv_ref,
                              gamma_ref, o_ref, kT_ref, v_ref,
                              *, q_tile, k_tile, scale, use_bf16):
    # x_ref block: [1, C, L]   (full length, resident once per batch element)
    # kT_ref scratch: [L, C]   (key-major K cache), v_ref scratch: [C, L] (V cache)
    C = x_ref.shape[1]
    L = x_ref.shape[2]
    num_k = L // k_tile
    to_mm = (lambda a: a.astype(jnp.bfloat16)) if use_bf16 else (lambda a: a)

    # ---- K/V projection: once per batch element, cached in VMEM for all query tiles.
    # (qi grid axis is "arbitrary", so qi == 0 runs before any other qi of the same batch element.)
    @pl.when(pl.program_id(1) == 0)
    def _():
        x_full = x_ref[0]                                                        # [C, L]
        xm = to_mm(x_full)
        k = jnp.dot(to_mm(wk_ref[...]), xm,
                    preferred_element_type=jnp.float32) + bk_ref[...]            # [C, L]
        v = jnp.dot(to_mm(wv_ref[...]), xm,
                    preferred_element_type=jnp.float32) + bv_ref[...]            # [C, L]
        kT_ref[...] = k.T.astype(kT_ref.dtype)  # one [C,L]->[L,C] transpose per batch element
        v_ref[...] = v.astype(v_ref.dtype)

    # ---- Query slab (and residual) sliced from the already-resident full-length block.
    if q_tile == L:
        xq = x_ref[0]                                                            # [C, TQ]
    else:
        q_start = pl.multiple_of(pl.program_id(1) * q_tile, q_tile)
        xq = x_ref[0, :, pl.ds(q_start, q_tile)]                                 # [C, TQ]

    # Q projection: 1x1 Conv1d == channel-mixing matmul + bias broadcast along length.
    q = jnp.dot(to_mm(wq_ref[...]), to_mm(xq),
                preferred_element_type=jnp.float32) + bq_ref[...]                # [C, TQ]
    q_mm = to_mm(q)

    def kv_step(kidx, carry):
        m, l, acc = carry
        start = kidx * k_tile
        if not isinstance(start, int):
            start = pl.multiple_of(start, k_tile)
        kt = kT_ref[pl.ds(start, k_tile), :]                                     # [TK, C]
        vt = v_ref[:, pl.ds(start, k_tile)]                                      # [C, TK]

        # energy tile [TK, TQ] = K^T @ Q (standard matmul); post-matmul 1/sqrt(C) multiply and a
        # single compare+select NaN/Inf zeroing (abs(e) < inf is False for NaN and +-inf),
        # matching the reference's stabilization semantics.
        e = jnp.dot(kt, q_mm, preferred_element_type=jnp.float32) * scale
        e = jnp.where(jnp.abs(e) < jnp.inf, e, 0.0)

        # Online softmax over the key (sublane) axis; stats are [1, TQ] rows that broadcast
        # straight onto the channel-major [C, TQ] accumulator (no relayouts / transposes).
        m_new = jnp.maximum(m, jnp.max(e, axis=0, keepdims=True))                # [1, TQ]
        alpha = jnp.exp(m - m_new)                                               # [1, TQ]
        p = jnp.exp(e - m_new)                                                   # [TK, TQ]
        l_new = alpha * l + jnp.sum(p, axis=0, keepdims=True)                    # [1, TQ]

        # PV accumulation: V @ P -> [C, TQ] (standard matmul; already in the output layout).
        pv = jnp.dot(vt, to_mm(p), preferred_element_type=jnp.float32)           # [C, TQ]
        acc_new = alpha * acc + pv
        return m_new, l_new, acc_new

    TQ = q.shape[1]
    m0 = jnp.full((1, TQ), -jnp.inf, dtype=jnp.float32)
    l0 = jnp.zeros((1, TQ), dtype=jnp.float32)
    acc0 = jnp.zeros((C, TQ), dtype=jnp.float32)

    if num_k == 1:
        m, l, acc = kv_step(0, (m0, l0, acc0))
    else:
        # Unrolled so the LLO scheduler sees across iterations (MXU pushes overlap the softmax).
        m, l, acc = jax.lax.fori_loop(0, num_k, kv_step, (m0, l0, acc0),
                                      unroll=(num_k if num_k <= 8 else 4))

    # Normalize after the PV matmul: one reciprocal per query column (+1e-10 as in the reference).
    inv_l = pl.reciprocal(l + 1e-10)                                             # [1, TQ]
    out = acc * inv_l                                                            # [C, TQ]

    # gamma * out + x  (gamma is a scalar in SMEM); channel-major already -> no output transpose.
    o_ref[0] = gamma_ref[0] * out + xq


def _pick_tile(length, target):
    """Largest multiple-of-128 tile <= target that divides `length`; else the full length."""
    if length % 128 == 0 and target >= 128 and length > target:
        t = (min(target, length) // 128) * 128
        while t >= 128 and length % t != 0:
            t -= 128
        if t >= 128:
            return t
    return length


def spectral_attention(x, wq, bq, wk, bk, wv, bv, gamma,
                       *, q_tile_target=256, k_tile_target=512, use_bf16_matmul=False):
    """x: [B, C, L] float32; wq/wk/wv: [C, C]; bq/bk/bv: [C]; gamma: scalar.

    q_tile_target / k_tile_target bound the VMEM working set and the TK x TQ softmax tile
    (v5e: prefer ~128/256; v6e/v7x: 256/512 is fine).  MXU utilization scales with C on the
    256x256 MXUs of v6e/v7x, so padding C toward a multiple of 256 in the surrounding model helps.
    use_bf16_matmul=True casts MXU operands to bf16 (f32 accumulation) for 2-4x matmul throughput
    at a small accuracy cost (loosen the 1e-5 check if enabled).
    """
    B, C, L = x.shape
    x = x.astype(jnp.float32)

    wq = wq.astype(jnp.float32)
    wk = wk.astype(jnp.float32)
    wv = wv.astype(jnp.float32)
    bq2 = bq.reshape(C, 1).astype(jnp.float32)
    bk2 = bk.reshape(C, 1).astype(jnp.float32)
    bv2 = bv.reshape(C, 1).astype(jnp.float32)
    gamma1 = jnp.reshape(gamma, (1,)).astype(jnp.float32)

    tq = _pick_tile(L, q_tile_target)
    tk = _pick_tile(L, k_tile_target)
    num_q = L // tq
    scale = 1.0 / math.sqrt(C)
    kv_dtype = jnp.bfloat16 if use_bf16_matmul else jnp.float32
    kv_itemsize = 2 if use_bf16_matmul else 4

    kernel = functools.partial(spectral_attention_kernel,
                               q_tile=tq, k_tile=tk, scale=scale, use_bf16=use_bf16_matmul)

    # Explicit VMEM budget (bytes): x block (double-buffered) + K/V projection temporaries +
    # K^T/V caches + output blocks + weights/biases + in-loop TKxTQ / CxTQ temporaries.
    # Raise the scoped-VMEM limit only when needed; cap at 64 MiB so it is also safe on v7x
    # (64 MiB physical VMEM per TensorCore).  For larger working sets, shrink the tile targets.
    vmem_needed = (2 * C * L * 4                 # x block, double-buffered
                   + 2 * C * L * 4               # k/v projection temporaries (once per batch)
                   + 2 * L * C * kv_itemsize     # K^T / V caches (scratch, single copy each)
                   + 2 * C * tq * 4              # output block, double-buffered
                   + 2 * 3 * (C * C + C) * 4     # weights + biases, double-buffered
                   + 3 * tk * tq * 4             # e / p temporaries in the key loop
                   + 4 * C * tq * 4)             # q / acc / out temporaries
    vmem_limit = None
    if vmem_needed > 16 * 1024 * 1024:
        vmem_limit = min(max(int(vmem_needed * 1.25), 32 * 1024 * 1024), 64 * 1024 * 1024)

    return pl.pallas_call(
        kernel,
        out_shape=jax.ShapeDtypeStruct((B, C, L), jnp.float32),
        grid_spec=pltpu.PrefetchScalarGridSpec(
            num_scalar_prefetch=0,
            grid=(B, num_q),
            in_specs=[
                # Single x input: full length per batch element (constant across qi -> only DMA'd
                # once per batch element); also supplies the query slab + residual.
                pl.BlockSpec((1, C, L), lambda b, qi: (b, 0, 0)),
                # Grid-invariant weights/biases (constant index_map -> fetched once).
                pl.BlockSpec((C, C), lambda b, qi: (0, 0)),       # Wq
                pl.BlockSpec((C, 1), lambda b, qi: (0, 0)),       # bq
                pl.BlockSpec((C, C), lambda b, qi: (0, 0)),       # Wk
                pl.BlockSpec((C, 1), lambda b, qi: (0, 0)),       # bk
                pl.BlockSpec((C, C), lambda b, qi: (0, 0)),       # Wv
                pl.BlockSpec((C, 1), lambda b, qi: (0, 0)),       # bv
                pl.BlockSpec(memory_space=pltpu.SMEM),            # gamma scalar
            ],
            out_specs=pl.BlockSpec((1, C, tq), lambda b, qi: (b, 0, qi)),
            scratch_shapes=[
                pltpu.VMEM((L, C), kv_dtype),                     # K^T cache (key-major)
                pltpu.VMEM((C, L), kv_dtype),                     # V cache (channel-major)
            ]),
        compiler_params=pltpu.CompilerParams(
            # qi must be "arbitrary": later query tiles reuse the K/V cache filled at qi == 0.
            dimension_semantics=("parallel", "arbitrary"),
            vmem_limit_bytes=vmem_limit),
    )(x, wq, bq2, wk, bk2, wv, bv2, gamma1)


def spectral_attention_ref(x, wq, bq, wk, bk, wv, bv, gamma):
    """Pure-JAX reference mirroring the PyTorch forward."""
    B, C, L = x.shape
    q = jnp.einsum('oc,bcl->bol', wq, x) + bq[None, :, None]
    k = jnp.einsum('oc,bcl->bol', wk, x) + bk[None, :, None]
    v = jnp.einsum('oc,bcl->bol', wv, x) + bv[None, :, None]
    energy = jnp.einsum('bcl,bcm->blm', q, k) / jnp.sqrt(jnp.float32(C))
    energy = jnp.where(jnp.isnan(energy) | jnp.isinf(energy), 0.0, energy)
    m = jnp.max(energy, axis=-1, keepdims=True)
    e = jnp.exp(energy - m)
    attn = e / (jnp.sum(e, axis=-1, keepdims=True) + 1e-10)
    out = jnp.einsum('bcl,bml->bcm', v, attn)   # value @ attention^T
    return gamma * out + x


if __name__ == "__main__":
    B, C, L = 2, 4, 16
    key = jax.random.PRNGKey(0)
    kx, kq, kbq, kk, kbk, kv, kbv = jax.random.split(key, 7)

    x = jax.random.normal(kx, (B, C, L), dtype=jnp.float32)
    # Conv1d(channels, channels, kernel_size=1) weights: [C_out, C_in] (+ bias [C_out])
    wq = jax.random.normal(kq, (C, C), dtype=jnp.float32) * 0.1
    bq = jax.random.normal(kbq, (C,), dtype=jnp.float32) * 0.1
    wk = jax.random.normal(kk, (C, C), dtype=jnp.float32) * 0.1
    bk = jax.random.normal(kbk, (C,), dtype=jnp.float32) * 0.1
    wv = jax.random.normal(kv, (C, C), dtype=jnp.float32) * 0.1
    bv = jax.random.normal(kbv, (C,), dtype=jnp.float32) * 0.1
    # Module inits gamma = 0.0; use a nonzero value so the attention path is exercised/tested.
    gamma = jnp.float32(0.5)

    out = spectral_attention(x, wq, bq, wk, bk, wv, bv, gamma)
    jax.block_until_ready(out)

    ref = spectral_attention_ref(x, wq, bq, wk, bk, wv, bv, gamma)
    np.testing.assert_allclose(np.asarray(out), np.asarray(ref), rtol=1e-5, atol=1e-5)

    print("KERNEL_OK")
</pallas_src>

<mosaic_0001>
module attributes {stable_mosaic.version = 11 : i64} {
  func.func @spectral_attention_kernel(%arg0: i32, %arg1: i32, %arg2: memref<1x4x16xf32, #tpu.memory_space<vmem>>, %arg3: memref<4x4xf32, #tpu.memory_space<vmem>>, %arg4: memref<4x1xf32, #tpu.memory_space<vmem>>, %arg5: memref<4x4xf32, #tpu.memory_space<vmem>>, %arg6: memref<4x1xf32, #tpu.memory_space<vmem>>, %arg7: memref<4x4xf32, #tpu.memory_space<vmem>>, %arg8: memref<4x1xf32, #tpu.memory_space<vmem>>, %arg9: memref<1xf32, #tpu.memory_space<smem>>, %arg10: memref<1x4x16xf32, #tpu.memory_space<vmem>>, %arg11: memref<16x4xf32, #tpu.memory_space<vmem>>, %arg12: memref<4x16xf32, #tpu.memory_space<vmem>>) attributes {dimension_semantics = [#tpu.dimension_semantics<parallel>, #tpu.dimension_semantics<arbitrary>], iteration_bounds = array<i64: 2, 1>, scalar_prefetch = 0 : i64, scratch_operands = 2 : i64, tpu.core_type = #tpu.core_type<tc>, window_params = [{transform_indices = @transform_0, window_bounds = array<i64: 1, 4, 16>}, {pipeline_mode = #tpu.pipeline_mode<synchronous>, transform_indices = @transform_1, window_bounds = array<i64: 4, 4>}, {pipeline_mode = #tpu.pipeline_mode<synchronous>, transform_indices = @transform_2, window_bounds = array<i64: 4, 1>}, {pipeline_mode = #tpu.pipeline_mode<synchronous>, transform_indices = @transform_3, window_bounds = array<i64: 4, 4>}, {pipeline_mode = #tpu.pipeline_mode<synchronous>, transform_indices = @transform_4, window_bounds = array<i64: 4, 1>}, {pipeline_mode = #tpu.pipeline_mode<synchronous>, transform_indices = @transform_5, window_bounds = array<i64: 4, 4>}, {pipeline_mode = #tpu.pipeline_mode<synchronous>, transform_indices = @transform_6, window_bounds = array<i64: 4, 1>}, {transform_indices = @transform_7, window_bounds = array<i64: 1>}, {transform_indices = @transform_8, window_bounds = array<i64: 1, 4, 16>}]} {
    %c0_i32 = arith.constant 0 : i32
    %0 = arith.cmpi eq, %arg1, %c0_i32 : i32
    %1 = arith.extui %0 : i1 to i32
    %c0_i32_0 = arith.constant 0 : i32
    %2 = arith.cmpi ne, %1, %c0_i32_0 : i32
    scf.if %2 {
      %c0_26 = arith.constant 0 : index
      %c0_27 = arith.constant 0 : index
      %c0_28 = arith.constant 0 : index
      %51 = vector.load %arg2[%c0_26, %c0_27, %c0_28] : memref<1x4x16xf32, #tpu.memory_space<vmem>>, vector<1x4x16xf32>
      %52 = vector.shape_cast %51 : vector<1x4x16xf32> to vector<4x16xf32>
      %c0_29 = arith.constant 0 : index
      %c0_30 = arith.constant 0 : index
      %53 = vector.load %arg5[%c0_29, %c0_30] : memref<4x4xf32, #tpu.memory_space<vmem>>, vector<4x4xf32>
      %cst_31 = arith.constant dense<0.000000e+00> : vector<4x16xf32>
      %54 = tpu.matmul %53, %52, %cst_31 {dimension_numbers = #tpu.dot_dimension_numbers<[1], [0], [0], [1], [0, 0, 1, 1], [], []>} : vector<4x4xf32>, vector<4x16xf32>, vector<4x16xf32> -> vector<4x16xf32>
      %c0_32 = arith.constant 0 : index
      %c0_33 = arith.constant 0 : index
      %55 = vector.load %arg6[%c0_32, %c0_33] : memref<4x1xf32, #tpu.memory_space<vmem>>, vector<4x1xf32>
      %56 = vector.broadcast %55 : vector<4x1xf32> to vector<4x16xf32>
      %57 = arith.addf %54, %56 : vector<4x16xf32>
      %c0_34 = arith.constant 0 : index
      %c0_35 = arith.constant 0 : index
      %58 = vector.load %arg7[%c0_34, %c0_35] : memref<4x4xf32, #tpu.memory_space<vmem>>, vector<4x4xf32>
      %cst_36 = arith.constant dense<0.000000e+00> : vector<4x16xf32>
      %59 = tpu.matmul %58, %52, %cst_36 {dimension_numbers = #tpu.dot_dimension_numbers<[1], [0], [0], [1], [0, 0, 1, 1], [], []>} : vector<4x4xf32>, vector<4x16xf32>, vector<4x16xf32> -> vector<4x16xf32>
      %c0_37 = arith.constant 0 : index
      %c0_38 = arith.constant 0 : index
      %60 = vector.load %arg8[%c0_37, %c0_38] : memref<4x1xf32, #tpu.memory_space<vmem>>, vector<4x1xf32>
      %61 = vector.broadcast %60 : vector<4x1xf32> to vector<4x16xf32>
      %62 = arith.addf %59, %61 : vector<4x16xf32>
      %63 = tpu.transpose %57, [1, 0] : vector<4x16xf32> -> vector<16x4xf32>
      %c0_39 = arith.constant 0 : index
      %c0_40 = arith.constant 0 : index
      %64 = vector.load %arg11[%c0_39, %c0_40] : memref<16x4xf32, #tpu.memory_space<vmem>>, vector<16x4xf32>
      tpu.vector_store %arg11[%c0_39, %c0_40], %63 {strides = array<i32>} : memref<16x4xf32, #tpu.memory_space<vmem>>, vector<16x4xf32>,
      %c0_41 = arith.constant 0 : index
      %c0_42 = arith.constant 0 : index
      %65 = vector.load %arg12[%c0_41, %c0_42] : memref<4x16xf32, #tpu.memory_space<vmem>>, vector<4x16xf32>
      tpu.vector_store %arg12[%c0_41, %c0_42], %62 {strides = array<i32>} : memref<4x16xf32, #tpu.memory_space<vmem>>, vector<4x16xf32>,
    } else {
    }
    %c0 = arith.constant 0 : index
    %c0_1 = arith.constant 0 : index
    %c0_2 = arith.constant 0 : index
    %3 = vector.load %arg2[%c0, %c0_1, %c0_2] : memref<1x4x16xf32, #tpu.memory_space<vmem>>, vector<1x4x16xf32>
    %4 = vector.shape_cast %3 : vector<1x4x16xf32> to vector<4x16xf32>
    %c0_3 = arith.constant 0 : index
    %c0_4 = arith.constant 0 : index
    %5 = vector.load %arg3[%c0_3, %c0_4] : memref<4x4xf32, #tpu.memory_space<vmem>>, vector<4x4xf32>
    %cst = arith.constant dense<0.000000e+00> : vector<4x16xf32>
    %6 = tpu.matmul %5, %4, %cst {dimension_numbers = #tpu.dot_dimension_numbers<[1], [0], [0], [1], [0, 0, 1, 1], [], []>} : vector<4x4xf32>, vector<4x16xf32>, vector<4x16xf32> -> vector<4x16xf32>
    %c0_5 = arith.constant 0 : index
    %c0_6 = arith.constant 0 : index
    %7 = vector.load %arg4[%c0_5, %c0_6] : memref<4x1xf32, #tpu.memory_space<vmem>>, vector<4x1xf32>
    %8 = vector.broadcast %7 : vector<4x1xf32> to vector<4x16xf32>
    %9 = arith.addf %6, %8 : vector<4x16xf32>
    %cst_7 = arith.constant 0xFF800000 : f32
    %10 = vector.broadcast %cst_7 : f32 to vector<1x16xf32>
    %cst_8 = arith.constant 0.000000e+00 : f32
    %11 = vector.broadcast %cst_8 : f32 to vector<1x16xf32>
    %cst_9 = arith.constant 0.000000e+00 : f32
    %12 = vector.broadcast %cst_9 : f32 to vector<4x16xf32>
    %c0_10 = arith.constant 0 : index
    %c0_11 = arith.constant 0 : index
    %13 = vector.load %arg11[%c0_10, %c0_11] : memref<16x4xf32, #tpu.memory_space<vmem>>, vector<16x4xf32>
    %c0_12 = arith.constant 0 : index
    %c0_13 = arith.constant 0 : index
    %14 = vector.load %arg12[%c0_12, %c0_13] : memref<4x16xf32, #tpu.memory_space<vmem>>, vector<4x16xf32>
    %cst_14 = arith.constant dense<0.000000e+00> : vector<16x16xf32>
    %15 = tpu.matmul %13, %9, %cst_14 {dimension_numbers = #tpu.dot_dimension_numbers<[1], [0], [0], [1], [0, 0, 1, 1], [], []>} : vector<16x4xf32>, vector<4x16xf32>, vector<16x16xf32> -> vector<16x16xf32>
    %cst_15 = arith.constant 5.000000e-01 : f32
    %16 = vector.broadcast %cst_15 : f32 to vector<16x16xf32>
    %17 = arith.mulf %15, %16 : vector<16x16xf32>
    %18 = math.absf %17 : vector<16x16xf32>
    %cst_16 = arith.constant 0x7F800000 : f32
    %19 = vector.broadcast %cst_16 : f32 to vector<16x16xf32>
    %20 = arith.cmpf olt, %18, %19 : vector<16x16xf32>
    %cst_17 = arith.constant 0.000000e+00 : f32
    %21 = vector.broadcast %cst_17 : f32 to vector<16x16xf32>
    %22 = arith.select %20, %17, %21 : vector<16x16xi1>, vector<16x16xf32>
    %cst_18 = arith.constant dense<0xFF800000> : vector<16xf32>
    %23 = vector.multi_reduction <maximumf>, %22, %cst_18 [0] : vector<16x16xf32> to vector<16xf32>
    %24 = vector.shape_cast %23 : vector<16xf32> to vector<1x16xf32>
    %25 = arith.maximumf %10, %24 : vector<1x16xf32>
    %26 = arith.subf %10, %25 : vector<1x16xf32>
    %27 = math.exp %26 : vector<1x16xf32>
    %28 = vector.broadcast %25 : vector<1x16xf32> to vector<16x16xf32>
    %29 = arith.subf %22, %28 : vector<16x16xf32>
    %30 = math.exp %29 : vector<16x16xf32>
    %31 = arith.mulf %27, %11 : vector<1x16xf32>
    %cst_19 = arith.constant dense<0.000000e+00> : vector<16xf32>
    %32 = vector.multi_reduction <add>, %30, %cst_19 [0] : vector<16x16xf32> to vector<16xf32>
    %33 = vector.shape_cast %32 : vector<16xf32> to vector<1x16xf32>
    %34 = arith.addf %31, %33 : vector<1x16xf32>
    %cst_20 = arith.constant dense<0.000000e+00> : vector<4x16xf32>
    %35 = tpu.matmul %14, %30, %cst_20 {dimension_numbers = #tpu.dot_dimension_numbers<[1], [0], [0], [1], [0, 0, 1, 1], [], []>} : vector<4x16xf32>, vector<16x16xf32>, vector<4x16xf32> -> vector<4x16xf32>
    %36 = vector.broadcast %27 : vector<1x16xf32> to vector<4x16xf32>
    %37 = arith.mulf %36, %12 : vector<4x16xf32>
    %38 = arith.addf %37, %35 : vector<4x16xf32>
    %cst_21 = arith.constant 1.000000e-10 : f32
    %39 = vector.broadcast %cst_21 : f32 to vector<1x16xf32>
    %40 = arith.addf %34, %39 : vector<1x16xf32>
    %41 = tpu.reciprocal %40 : vector<1x16xf32> -> vector<1x16xf32>
    %42 = vector.broadcast %41 : vector<1x16xf32> to vector<4x16xf32>
    %43 = arith.mulf %38, %42 : vector<4x16xf32>
    %c0_22 = arith.constant 0 : index
    %44 = memref.load %arg9[%c0_22] : memref<1xf32, #tpu.memory_space<smem>>
    %45 = vector.broadcast %44 : f32 to vector<4x16xf32>
    %46 = arith.mulf %45, %43 : vector<4x16xf32>
    %47 = arith.addf %46, %4 : vector<4x16xf32>
    %c0_23 = arith.constant 0 : index
    %c0_24 = arith.constant 0 : index
    %c0_25 = arith.constant 0 : index
    %48 = vector.load %arg10[%c0_23, %c0_24, %c0_25] : memref<1x4x16xf32, #tpu.memory_space<vmem>>, vector<1x4x16xf32>
    %49 = vector.shape_cast %48 : vector<1x4x16xf32> to vector<4x16xf32>
    %50 = vector.shape_cast %47 : vector<4x16xf32> to vector<1x4x16xf32>
    tpu.vector_store %arg10[%c0_23, %c0_24, %c0_25], %50 {strides = array<i32>} : memref<1x4x16xf32, #tpu.memory_space<vmem>>, vector<1x4x16xf32>,
    return
  }
  func.func @transform_0(%arg0: i32, %arg1: i32) -> (i32, i32, i32) {
    %c0_i32 = arith.constant 0 : i32
    %c0_i32_0 = arith.constant 0 : i32
    %c0_i32_1 = arith.constant 0 : i32
    return %arg0, %c0_i32, %c0_i32_0 : i32, i32, i32
  }
  func.func @transform_1(%arg0: i32, %arg1: i32) -> (i32, i32) {
    %c0_i32 = arith.constant 0 : i32
    %c0_i32_0 = arith.constant 0 : i32
    %c0_i32_1 = arith.constant 0 : i32
    return %c0_i32, %c0_i32_0 : i32, i32
  }
  func.func @transform_2(%arg0: i32, %arg1: i32) -> (i32, i32) {
    %c0_i32 = arith.constant 0 : i32
    %c0_i32_0 = arith.constant 0 : i32
    %c0_i32_1 = arith.constant 0 : i32
    return %c0_i32, %c0_i32_0 : i32, i32
  }
  func.func @transform_3(%arg0: i32, %arg1: i32) -> (i32, i32) {
    %c0_i32 = arith.constant 0 : i32
    %c0_i32_0 = arith.constant 0 : i32
    %c0_i32_1 = arith.constant 0 : i32
    return %c0_i32, %c0_i32_0 : i32, i32
  }
  func.func @transform_4(%arg0: i32, %arg1: i32) -> (i32, i32) {
    %c0_i32 = arith.constant 0 : i32
    %c0_i32_0 = arith.constant 0 : i32
    %c0_i32_1 = arith.constant 0 : i32
    return %c0_i32, %c0_i32_0 : i32, i32
  }
  func.func @transform_5(%arg0: i32, %arg1: i32) -> (i32, i32) {
    %c0_i32 = arith.constant 0 : i32
    %c0_i32_0 = arith.constant 0 : i32
    %c0_i32_1 = arith.constant 0 : i32
    return %c0_i32, %c0_i32_0 : i32, i32
  }
  func.func @transform_6(%arg0: i32, %arg1: i32) -> (i32, i32) {
    %c0_i32 = arith.constant 0 : i32
    %c0_i32_0 = arith.constant 0 : i32
    %c0_i32_1 = arith.constant 0 : i32
    return %c0_i32, %c0_i32_0 : i32, i32
  }
  func.func @transform_7(%arg0: i32, %arg1: i32) -> i32 {
    %c0_i32 = arith.constant 0 : i32
    %c0_i32_0 = arith.constant 0 : i32
    return %c0_i32 : i32
  }
  func.func @transform_8(%arg0: i32, %arg1: i32) -> (i32, i32, i32) {
    %c0_i32 = arith.constant 0 : i32
    %c0_i32_0 = arith.constant 0 : i32
    return %arg0, %c0_i32, %arg1 : i32, i32, i32
  }
}

</mosaic_0001>

<llo_original>
// kernel: tpu_custom_call.1
$region0: #{tpu_custom_call.1}
  #allocation0 [shape = 'u32[]', space=smem, size = 0x4, offset = 0x4, fixed_abs, tag = 'smem constant byte address 0x4 - core index']
  #allocation1 [shape = 'u32[144,128]{1,0:T(1,128)}', space=vmem, size = 0x12000, scoped, tag = 'internal scratch']
  #allocation2 [shape = 'f32[16,4]{1,0:T(8,128)}', space=vmem, size = 0x2000, scoped, tag = 'scratch operand']
  #allocation3 [shape = 'f32[4,16]{1,0:T(4,128)}', space=vmem, size = 0x800, scoped, tag = 'scratch operand']
  #allocation4 [shape = 'f32[1]{0:T(128)S(6)}', space=smem, size = 0x200, scoped, tag = 'scoped memory for tpu_custom_call.1']
  %s0 = inlined_call_operand.vmem [shape: f32[2,4,16], index: 0, kind: input, shape index: {}]
  %s1 = inlined_call_operand.vmem [shape: f32[4,4], index: 1, kind: input, shape index: {}]
  %s2 = inlined_call_operand.vmem [shape: f32[4,1], index: 2, kind: input, shape index: {}]
  %s3 = inlined_call_operand.vmem [shape: f32[4,4], index: 3, kind: input, shape index: {}]
  %s4 = inlined_call_operand.vmem [shape: f32[4,1], index: 4, kind: input, shape index: {}]
  %s5 = inlined_call_operand.vmem [shape: f32[4,4], index: 5, kind: input, shape index: {}]
  %s6 = inlined_call_operand.vmem [shape: f32[4,1], index: 6, kind: input, shape index: {}]
  %s7 = inlined_call_operand.<no memory space> [shape: f32[1], index: 7, kind: input, shape index: {}]
  %s8 = inlined_call_operand.hbm [shape: f32[2,4,16], index: 8, kind: output, shape index: {}]
  %s9 = sld [smem:[#allocation0]]
  $region69: #{tpu_custom_call.1} parent=0
    _
  %s11 = ssub.s32 1, %s9
  %s12 = scalar_select 0, %s11, %s9
  %13 = sst [smem:[#allocation4]] %s7
  $region1: #{tpu_custom_call.1} parent=0
    #allocation5 [shape = 'u8[4096]{0}', space=vmem, size = 0x1000, scoped, tag = 'output window, operand 0']
    #allocation6 [shape = 's32[2]{0}', space=sflag, size = 0x8, scoped, tag = 'scoped memory for tpu_custom_call.1']
    %14 = vsyncpa [#allocation6], 0
    %s15 = scalar_lea.sflag [#allocation6], 1
    %16 = vsyncpa %s15, 0
    loop: start=0, step=1, limit=4
    $region2: #{tpu_custom_call.1} parent=1 // loop_pre_header
      _
    $region3: #{tpu_custom_call.1} parent=1 // loop_header
      %s18 = sphi 0, %s22
      %p19 = scmp.ge.s32.totalorder %s18, 4
      %s25 = sphi 0, %s37
      %s26 = sphi 0, %s33
      %s27 = sphi 0, %s25
      %s28 = sphi 0, %s26
      %s29 = sphi 0, %s27
      %s30 = sphi 0, %s28
      %s40 = sphi 0, %s42
      %s43 = sphi 0, %s40
      %s44 = sphi 0, %s43
      %s60 = sphi 0, %s44
      %s64 = sphi 0, %s64
      %s66 = sphi 0, %s64
      %s67 = sphi 0, %s66
      %s81 = sphi 0, %s67
      %s85 = sphi 0, %s85
      %s87 = sphi 0, %s85
      %s88 = sphi 0, %s87
      %s102 = sphi 0, %s88
      %s106 = sphi 0, %s106
      %s108 = sphi 0, %s106
      %s109 = sphi 0, %s108
      %s123 = sphi 0, %s109
      %s127 = sphi 0, %s127
      %s129 = sphi 0, %s127
      %s130 = sphi 0, %s129
      %s144 = sphi 0, %s130
      %s148 = sphi 0, %s148
      %s150 = sphi 0, %s148
      %s151 = sphi 0, %s150
      %s165 = sphi 0, %s151
      %s169 = sphi 0, %s169
      %s171 = sphi 0, %s169
      %s172 = sphi 0, %s171
      %s186 = sphi 0, %s172
      %s190 = sphi 0, %s190
      %s192 = sphi 0, %s190
      %s193 = sphi 0, %s192
      %s207 = sphi 0, %s193
      %s215 = sphi 0, %s217
      %s218 = sphi 0, %s215
      %s219 = sphi 0, %s218
      %s235 = sphi 0, %s219
    $region4: #{tpu_custom_call.1} parent=1 // loop_header_branch
      %21 = sbr.rel (%p19) target = $region8
    $region5: #{tpu_custom_call.1} parent=1 // loop_body
      %s23 = ssub.s32 %s18, 1
      %s24 = ssub.s32 %s18, 2
      %s31 = sadd.s32 1, %s26
      %p32 = scmp.ge.s32.totalorder %s31, 1
      %s33 = scalar_select %p32, 0, %s31
      %s34 = sadd.s32 1, %s25
      %s35 = scalar_select %p32, %s34, %s25
      %p36 = scmp.ge.s32.totalorder %s35, 2
      %s37 = scalar_select %p36, 0, %s35
      %s38 = ssub.s32 %s25, %s37
      %p39 = scmp.eq.s32.totalorder %s38, 0
      %s41 = sadd.s32 %s40, 1
      %s42 = scalar_select %p39, %s40, %s41
      %p45 = pneg %p39
      %p46 = scmp.eq.s32.totalorder %s18, 1
      %p47 = por %p45, %p46
      %p48 = scmp.ne.s32.totalorder %s40, %s43
      %p49 = scmp.eq.s32.totalorder %s18, 0
      %p50 = por %p48, %p49
      %p51 = scmp.ne.s32.totalorder %s40, %s43
      %p52 = scmp.eq.s32.totalorder %s23, 1
      %p53 = por %p51, %p52
      %p54 = scmp.ne.s32.totalorder %s43, %s44
      %p55 = scmp.eq.s32.totalorder %s23, 0
      %p56 = por %p54, %p55
      %p57 = scmp.ne.s32.totalorder %s43, %s44
      %p58 = scmp.eq.s32.totalorder %s24, 1
      %p59 = por %p57, %p58
      %p61 = scmp.ne.s32.totalorder %s44, %s60
      %p62 = scmp.eq.s32.totalorder %s24, 0
      %p63 = por %p61, %p62
      %s65 = sadd.s32 %s64, 1
      %p68 = scmp.eq.s32.totalorder %s18, 1
      %p69 = scmp.ne.s32.totalorder %s64, %s66
      %p70 = scmp.eq.s32.totalorder %s18, 0
      %p71 = por %p69, %p70
      %p72 = scmp.ne.s32.totalorder %s64, %s66
      %p73 = scmp.eq.s32.totalorder %s23, 1
      %p74 = por %p72, %p73
      %p75 = scmp.ne.s32.totalorder %s66, %s67
      %p76 = scmp.eq.s32.totalorder %s23, 0
      %p77 = por %p75, %p76
      %p78 = scmp.ne.s32.totalorder %s66, %s67
      %p79 = scmp.eq.s32.totalorder %s24, 1
      %p80 = por %p78, %p79
      %p82 = scmp.ne.s32.totalorder %s67, %s81
      %p83 = scmp.eq.s32.totalorder %s24, 0
      %p84 = por %p82, %p83
      %s86 = sadd.s32 %s85, 1
      %p89 = scmp.eq.s32.totalorder %s18, 1
      %p90 = scmp.ne.s32.totalorder %s85, %s87
      %p91 = scmp.eq.s32.totalorder %s18, 0
      %p92 = por %p90, %p91
      %p93 = scmp.ne.s32.totalorder %s85, %s87
      %p94 = scmp.eq.s32.totalorder %s23, 1
      %p95 = por %p93, %p94
      %p96 = scmp.ne.s32.totalorder %s87, %s88
      %p97 = scmp.eq.s32.totalorder %s23, 0
      %p98 = por %p96, %p97
      %p99 = scmp.ne.s32.totalorder %s87, %s88
      %p100 = scmp.eq.s32.totalorder %s24, 1
      %p101 = por %p99, %p100
      %p103 = scmp.ne.s32.totalorder %s88, %s102
      %p104 = scmp.eq.s32.totalorder %s24, 0
      %p105 = por %p103, %p104
      %s107 = sadd.s32 %s106, 1
      %p110 = scmp.eq.s32.totalorder %s18, 1
      %p111 = scmp.ne.s32.totalorder %s106, %s108
      %p112 = scmp.eq.s32.totalorder %s18, 0
      %p113 = por %p111, %p112
      %p114 = scmp.ne.s32.totalorder %s106, %s108
      %p115 = scmp.eq.s32.totalorder %s23, 1
      %p116 = por %p114, %p115
      %p117 = scmp.ne.s32.totalorder %s108, %s109
      %p118 = scmp.eq.s32.totalorder %s23, 0
      %p119 = por %p117, %p118
      %p120 = scmp.ne.s32.totalorder %s108, %s109
      %p121 = scmp.eq.s32.totalorder %s24, 1
      %p122 = por %p120, %p121
      %p124 = scmp.ne.s32.totalorder %s109, %s123
      %p125 = scmp.eq.s32.totalorder %s24, 0
      %p126 = por %p124, %p125
      %s128 = sadd.s32 %s127, 1
      %p131 = scmp.eq.s32.totalorder %s18, 1
      %p132 = scmp.ne.s32.totalorder %s127, %s129
      %p133 = scmp.eq.s32.totalorder %s18, 0
      %p134 = por %p132, %p133
      %p135 = scmp.ne.s32.totalorder %s127, %s129
      %p136 = scmp.eq.s32.totalorder %s23, 1
      %p137 = por %p135, %p136
      %p138 = scmp.ne.s32.totalorder %s129, %s130
      %p139 = scmp.eq.s32.totalorder %s23, 0
      %p140 = por %p138, %p139
      %p141 = scmp.ne.s32.totalorder %s129, %s130
      %p142 = scmp.eq.s32.totalorder %s24, 1
      %p143 = por %p141, %p142
      %p145 = scmp.ne.s32.totalorder %s130, %s144
      %p146 = scmp.eq.s32.totalorder %s24, 0
      %p147 = por %p145, %p146
      %s149 = sadd.s32 %s148, 1
      %p152 = scmp.eq.s32.totalorder %s18, 1
      %p153 = scmp.ne.s32.totalorder %s148, %s150
      %p154 = scmp.eq.s32.totalorder %s18, 0
      %p155 = por %p153, %p154
      %p156 = scmp.ne.s32.totalorder %s148, %s150
      %p157 = scmp.eq.s32.totalorder %s23, 1
      %p158 = por %p156, %p157
      %p159 = scmp.ne.s32.totalorder %s150, %s151
      %p160 = scmp.eq.s32.totalorder %s23, 0
      %p161 = por %p159, %p160
      %p162 = scmp.ne.s32.totalorder %s150, %s151
      %p163 = scmp.eq.s32.totalorder %s24, 1
      %p164 = por %p162, %p163
      %p166 = scmp.ne.s32.totalorder %s151, %s165
      %p167 = scmp.eq.s32.totalorder %s24, 0
      %p168 = por %p166, %p167
      %s170 = sadd.s32 %s169, 1
      %p173 = scmp.eq.s32.totalorder %s18, 1
      %p174 = scmp.ne.s32.totalorder %s169, %s171
      %p175 = scmp.eq.s32.totalorder %s18, 0
      %p176 = por %p174, %p175
      %p177 = scmp.ne.s32.totalorder %s169, %s171
      %p178 = scmp.eq.s32.totalorder %s23, 1
      %p179 = por %p177, %p178
      %p180 = scmp.ne.s32.totalorder %s171, %s172
      %p181 = scmp.eq.s32.totalorder %s23, 0
      %p182 = por %p180, %p181
      %p183 = scmp.ne.s32.totalorder %s171, %s172
      %p184 = scmp.eq.s32.totalorder %s24, 1
      %p185 = por %p183, %p184
      %p187 = scmp.ne.s32.totalorder %s172, %s186
      %p188 = scmp.eq.s32.totalorder %s24, 0
      %p189 = por %p187, %p188
      %s191 = sadd.s32 %s190, 1
      %p194 = scmp.eq.s32.totalorder %s18, 1
      %p195 = scmp.ne.s32.totalorder %s190, %s192
      %p196 = scmp.eq.s32.totalorder %s18, 0
      %p197 = por %p195, %p196
      %p198 = scmp.ne.s32.totalorder %s190, %s192
      %p199 = scmp.eq.s32.totalorder %s23, 1
      %p200 = por %p198, %p199
      %p201 = scmp.ne.s32.totalorder %s192, %s193
      %p202 = scmp.eq.s32.totalorder %s23, 0
      %p203 = por %p201, %p202
      %p204 = scmp.ne.s32.totalorder %s192, %s193
      %p205 = scmp.eq.s32.totalorder %s24, 1
      %p206 = por %p204, %p205
      %p208 = scmp.ne.s32.totalorder %s193, %s207
      %p209 = scmp.eq.s32.totalorder %s24, 0
      %p210 = por %p208, %p209
      %s211 = ssub.s32 %s25, %s37
      %s212 = ssub.s32 %s26, %s33
      %s213 = sor.u32 %s211, %s212
      %p214 = scmp.eq.s32.totalorder %s213, 0
      %s216 = sadd.s32 %s215, 1
      %s217 = scalar_select %p214, %s215, %s216
      %p220 = pneg %p214
      %p221 = scmp.eq.s32.totalorder %s18, 1
      %p222 = por %p220, %p221
      %p223 = scmp.ne.s32.totalorder %s215, %s218
      %p224 = scmp.eq.s32.totalorder %s18, 0
      %p225 = por %p223, %p224
      %p226 = scmp.ne.s32.totalorder %s215, %s218
      %p227 = scmp.eq.s32.totalorder %s23, 1
      %p228 = por %p226, %p227
      %p229 = scmp.ne.s32.totalorder %s218, %s219
      %p230 = scmp.eq.s32.totalorder %s23, 0
      %p231 = por %p229, %p230
      %p232 = scmp.ne.s32.totalorder %s218, %s219
      %p233 = scmp.eq.s32.totalorder %s24, 1
      %p234 = por %p232, %p233
      %p236 = scmp.ne.s32.totalorder %s219, %s235
      %p237 = scmp.eq.s32.totalorder %s24, 0
      %p238 = por %p236, %p237
      %p239 = scmp.le.s32.totalorder 1, %s18
      %p240 = scmp.lt.s32.totalorder %s18, 3
      %p241 = pnand %p239, %p240
      %p242 = pneg %p241
      // Predicated region
      $region9: #{tpu_custom_call.1} parent=5 // pred_check
        _
      $region10: #{tpu_custom_call.1} parent=5 // pred_check_branch
        %244 = sbr.rel (%p241) target = $region12
      $region11: #{tpu_custom_call.1} parent=5 // pred_region
        %s245 = ssub.s32 %s18, 1
        // Predicated region
        $region13: #{tpu_custom_call.1} parent=11 // pred_check
          %p246 = pneg %p77
        $region14: #{tpu_custom_call.1} parent=11 // pred_check_branch
          %248 = sbr.rel (%p246) target = $region16
        $region15: #{tpu_custom_call.1} parent=11 // pred_region
          _
        $region16: #{tpu_custom_call.1} parent=11 // pred_fallthru
          _
        // Predicated region
        $region17: #{tpu_custom_call.1} parent=11 // pred_check
          %p249 = pneg %p98
        $region18: #{tpu_custom_call.1} parent=11 // pred_check_branch
          %251 = sbr.rel (%p249) target = $region20
        $region19: #{tpu_custom_call.1} parent=11 // pred_region
          _
        $region20: #{tpu_custom_call.1} parent=11 // pred_fallthru
          _
        // Predicated region
        $region21: #{tpu_custom_call.1} parent=11 // pred_check
          %p252 = pneg %p119
        $region22: #{tpu_custom_call.1} parent=11 // pred_check_branch
          %254 = sbr.rel (%p252) target = $region24
        $region23: #{tpu_custom_call.1} parent=11 // pred_region
          _
        $region24: #{tpu_custom_call.1} parent=11 // pred_fallthru
          _
        // Predicated region
        $region25: #{tpu_custom_call.1} parent=11 // pred_check
          %p255 = pneg %p140
        $region26: #{tpu_custom_call.1} parent=11 // pred_check_branch
          %257 = sbr.rel (%p255) target = $region28
        $region27: #{tpu_custom_call.1} parent=11 // pred_region
          _
        $region28: #{tpu_custom_call.1} parent=11 // pred_fallthru
          _
        // Predicated region
        $region29: #{tpu_custom_call.1} parent=11 // pred_check
          %p258 = pneg %p161
        $region30: #{tpu_custom_call.1} parent=11 // pred_check_branch
          %260 = sbr.rel (%p258) target = $region32
        $region31: #{tpu_custom_call.1} parent=11 // pred_region
          _
        $region32: #{tpu_custom_call.1} parent=11 // pred_fallthru
          _
        // Predicated region
        $region33: #{tpu_custom_call.1} parent=11 // pred_check
          %p261 = pneg %p182
        $region34: #{tpu_custom_call.1} parent=11 // pred_check_branch
          %263 = sbr.rel (%p261) target = $region36
        $region35: #{tpu_custom_call.1} parent=11 // pred_region
          _
        $region36: #{tpu_custom_call.1} parent=11 // pred_fallthru
          _
        // Predicated region
        $region37: #{tpu_custom_call.1} parent=11 // pred_check
          %p264 = pneg %p203
        $region38: #{tpu_custom_call.1} parent=11 // pred_check_branch
          %266 = sbr.rel (%p264) target = $region40
        $region39: #{tpu_custom_call.1} parent=11 // pred_region
          _
        $region40: #{tpu_custom_call.1} parent=11 // pred_fallthru
          _
      $region12: #{tpu_custom_call.1} parent=5 // pred_fallthru
        _
      %p267 = scmp.lt.s32.totalorder %s18, 2
      // Predicated region
      $region41: #{tpu_custom_call.1} parent=5 // pred_check
        %p268 = pneg %p267
      $region42: #{tpu_custom_call.1} parent=5 // pred_check_branch
        %270 = sbr.rel (%p268) target = $region44
      $region43: #{tpu_custom_call.1} parent=5 // pred_region
        // Predicated region
        $region45: #{tpu_custom_call.1} parent=43 // pred_check
          %p271 = pneg %p50
        $region46: #{tpu_custom_call.1} parent=43 // pred_check_branch
          %273 = sbr.rel (%p271) target = $region48
        $region47: #{tpu_custom_call.1} parent=43 // pred_region
          %p274 = scmp.lt.s32.totalorder %s25, 1
          %s275 = scalar_select %p274, %s25, 1
          %s276 = smul.addr %s275, 4
          %s277 = scalar_lea.vmem %s0, %s276
        $region48: #{tpu_custom_call.1} parent=43 // pred_fallthru
          _
      $region44: #{tpu_custom_call.1} parent=5 // pred_fallthru
        _
      %p278 = scmp.le.s32.totalorder 1, %s18
      %p279 = scmp.lt.s32.totalorder %s18, 3
      %p280 = pnand %p278, %p279
      %p281 = pneg %p280
      // Predicated region
      $region49: #{tpu_custom_call.1} parent=5 // pred_check
        _
      $region50: #{tpu_custom_call.1} parent=5 // pred_check_branch
        %283 = sbr.rel (%p280) target = $region52
      $region51: #{tpu_custom_call.1} parent=5 // pred_region
        %s284 = ssub.s32 %s18, 1
        %p285 = scmp.lt.s32.totalorder %s27, 1
        %s286 = scalar_select %p285, %s27, 1
        %s287 = smul.addr %s286, 4
        %s288 = scalar_lea.vmem %s0, %s287
        %p289 = pneg %p56
        %p290 = pneg %p53
        %p291 = pneg %p77
        %p292 = pneg %p74
        %p293 = pneg %p98
        %p294 = pneg %p95
        %p295 = pneg %p119
        %p296 = pneg %p116
        %p297 = pneg %p140
        %p298 = pneg %p137
        %p299 = pneg %p161
        %p300 = pneg %p158
        %p301 = pneg %p182
        %p302 = pneg %p179
        %p303 = pneg %p203
        %p304 = pneg %p200
        %p305 = pneg %p231
        %p306 = pneg %p228
        %s307 = sand.u32 %s218, 1
        %s308 = scalar_lea.sflag [#allocation6], %s307
        %s309 = sand.u32 %s218, 1
        %s310 = smul.addr %s309, 4
        %s311 = scalar_lea.vmem [#allocation5], %s310
        %p312 = scmp.lt.s32.totalorder %s27, 1
        %s313 = scalar_select %p312, %s27, 1
        %s314 = smul.addr %s313, 4
        %s315 = scalar_lea.vmem %s0, %s314
        %p316 = scmp.eq.s32.totalorder %s28, 0
        // Predicated region
        $region53: #{tpu_custom_call.1} parent=51 // pred_check
          %p317 = pneg %p316
        $region54: #{tpu_custom_call.1} parent=51 // pred_check_branch
          %319 = sbr.rel (%p317) target = $region56
        $region55: #{tpu_custom_call.1} parent=51 // pred_region
          %v320 = vld [vmem:[%s315] sm:$0xf]
          %v321 = vld [vmem:[%s3] sm:$0xf]
          %v322 = vld [vmem:[%s4] sm:$0xf]
          %324 = vset.pattern.permute.xlu0 0
          %325 = vperm.xlu0 %324, %v322
          %v326 = vpop.permute.xlu0 %325
          %vm328 = vcmask 31744
          %v330 = vsel %vm328, %v321, 0
          %vm332 = vcmask 1043456
          %v334 = vsel %vm332, %v320, 0
          %336 = vmatprep.subr.mxu0 0.0
          %337 = vmatpush1.msra.mxu0 0.0
          %338 = vmatprep.subr.mxu0 0.0
          %339 = vmatpush1.msra.mxu0 0.0
          %340 = vmatprep.subr.mxu0 0.0
          %341 = vmatpush1.msra.mxu0 0.0
          %342 = vmatprep.subr.mxu0 0.0
          %343 = vmatpush1.msra.mxu0 0.0
          %344 = vmatprep.subr.mxu0 0.0
          %345 = vmatpush1.msra.mxu0 0.0
          %346 = vmatprep.subr.mxu0 0.0
          %347 = vmatpush1.msra.mxu0 0.0
          %348 = vmatprep.subr.mxu0 0.0
          %349 = vmatpush1.msra.mxu0 0.0
          %350 = vmatprep.subr.mxu0 0.0
          %351 = vmatpush1.msra.mxu0 0.0
          %352 = vmatprep.subr.mxu0 0.0
          %353 = vmatpush1.msra.mxu0 0.0
          %354 = vmatprep.subr.mxu0 0.0
          %355 = vmatpush1.msra.mxu0 0.0
          %356 = vmatprep.subr.mxu0 0.0
          %357 = vmatpush1.msra.mxu0 0.0
          %358 = vmatprep.subr.mxu0 0.0
          %359 = vmatpush1.msra.mxu0 0.0
          %360 = vmatprep.subr.mxu0 0.0
          %361 = vmatpush1.msra.mxu0 0.0
          %362 = vmatprep.subr.mxu0 0.0
          %363 = vmatpush1.msra.mxu0 0.0
          %364 = vmatprep.subr.mxu0 0.0
          %365 = vmatpush1.msra.mxu0 0.0
          %366 = vmatprep.subr.mxu0 0.0
          %367 = vmatpush1.msra.mxu0 %v334
          %368 = vmatprep.subr.mxu0 0.0
          %369 = vmatpush2.msra.mxu0 0.0
          %370 = vmatprep.subr.mxu0 0.0
          %371 = vmatpush2.msra.mxu0 0.0
          %372 = vmatprep.subr.mxu0 0.0
          %373 = vmatpush2.msra.mxu0 0.0
          %374 = vmatprep.subr.mxu0 0.0
          %375 = vmatpush2.msra.mxu0 0.0
          %376 = vmatprep.subr.mxu0 0.0
          %377 = vmatpush2.msra.mxu0 0.0
          %378 = vmatprep.subr.mxu0 0.0
          %379 = vmatpush2.msra.mxu0 0.0
          %380 = vmatprep.subr.mxu0 0.0
          %381 = vmatpush2.msra.mxu0 0.0
          %382 = vmatprep.subr.mxu0 0.0
          %383 = vmatpush2.msra.mxu0 0.0
          %384 = vmatprep.subr.mxu0 0.0
          %385 = vmatpush2.msra.mxu0 0.0
          %386 = vmatprep.subr.mxu0 0.0
          %387 = vmatpush2.msra.mxu0 0.0
          %388 = vmatprep.subr.mxu0 0.0
          %389 = vmatpush2.msra.mxu0 0.0
          %390 = vmatprep.subr.mxu0 0.0
          %391 = vmatpush2.msra.mxu0 0.0
          %392 = vmatprep.subr.mxu0 0.0
          %393 = vmatpush2.msra.mxu0 0.0
          %394 = vmatprep.subr.mxu0 0.0
          %395 = vmatpush2.msra.mxu0 0.0
          %396 = vmatprep.subr.mxu0 0.0
          %397 = vmatpush2.msra.mxu0 0.0
          %398 = vmatprep.subr.mxu0 0.0
          %399 = vmatpush2.msra.mxu0 0.0
          %400 = vmatprep.mubr.f32.mxu0 0.0
          %401 = vmatmul.mubr.f32.gmra.mxu0 %v330
          %v402 = vpop.f32.mrf.mxu0
          %v403 = vadd.f32 %v326, %v402
          %v404 = vpop.f32.mrf.mxu0
          %405 = vdwg.mxu0
          %v406 = vld [vmem:[%s5] sm:$0xf]
          %v407 = vld [vmem:[%s6] sm:$0xf]
          %409 = vset.pattern.permute.xlu0 0
          %410 = vperm.xlu0 %409, %v407
          %v411 = vpop.permute.xlu0 %410
          %v414 = vsel %vm328, %v406, 0
          %416 = vmatprep.subr.mxu0 0.0
          %417 = vmatpush1.msra.mxu0 0.0
          %418 = vmatprep.subr.mxu0 0.0
          %419 = vmatpush1.msra.mxu0 0.0
          %420 = vmatprep.subr.mxu0 0.0
          %421 = vmatpush1.msra.mxu0 0.0
          %422 = vmatprep.subr.mxu0 0.0
          %423 = vmatpush1.msra.mxu0 0.0
          %424 = vmatprep.subr.mxu0 0.0
          %425 = vmatpush1.msra.mxu0 0.0
          %426 = vmatprep.subr.mxu0 0.0
          %427 = vmatpush1.msra.mxu0 0.0
          %428 = vmatprep.subr.mxu0 0.0
          %429 = vmatpush1.msra.mxu0 0.0
          %430 = vmatprep.subr.mxu0 0.0
          %431 = vmatpush1.msra.mxu0 0.0
          %432 = vmatprep.subr.mxu0 0.0
          %433 = vmatpush1.msra.mxu0 0.0
          %434 = vmatprep.subr.mxu0 0.0
          %435 = vmatpush1.msra.mxu0 0.0
          %436 = vmatprep.subr.mxu0 0.0
          %437 = vmatpush1.msra.mxu0 0.0
          %438 = vmatprep.subr.mxu0 0.0
          %439 = vmatpush1.msra.mxu0 0.0
          %440 = vmatprep.subr.mxu0 0.0
          %441 = vmatpush1.msra.mxu0 0.0
          %442 = vmatprep.subr.mxu0 0.0
          %443 = vmatpush1.msra.mxu0 0.0
          %444 = vmatprep.subr.mxu0 0.0
          %445 = vmatpush1.msra.mxu0 0.0
          %446 = vmatprep.subr.mxu0 0.0
          %447 = vmatpush1.msra.mxu0 %v334
          %448 = vmatprep.subr.mxu0 0.0
          %449 = vmatpush2.msra.mxu0 0.0
          %450 = vmatprep.subr.mxu0 0.0
          %451 = vmatpush2.msra.mxu0 0.0
          %452 = vmatprep.subr.mxu0 0.0
          %453 = vmatpush2.msra.mxu0 0.0
          %454 = vmatprep.subr.mxu0 0.0
          %455 = vmatpush2.msra.mxu0 0.0
          %456 = vmatprep.subr.mxu0 0.0
          %457 = vmatpush2.msra.mxu0 0.0
          %458 = vmatprep.subr.mxu0 0.0
          %459 = vmatpush2.msra.mxu0 0.0
          %460 = vmatprep.subr.mxu0 0.0
          %461 = vmatpush2.msra.mxu0 0.0
          %462 = vmatprep.subr.mxu0 0.0
          %463 = vmatpush2.msra.mxu0 0.0
          %464 = vmatprep.subr.mxu0 0.0
          %465 = vmatpush2.msra.mxu0 0.0
          %466 = vmatprep.subr.mxu0 0.0
          %467 = vmatpush2.msra.mxu0 0.0
          %468 = vmatprep.subr.mxu0 0.0
          %469 = vmatpush2.msra.mxu0 0.0
          %470 = vmatprep.subr.mxu0 0.0
          %471 = vmatpush2.msra.mxu0 0.0
          %472 = vmatprep.subr.mxu0 0.0
          %473 = vmatpush2.msra.mxu0 0.0
          %474 = vmatprep.subr.mxu0 0.0
          %475 = vmatpush2.msra.mxu0 0.0
          %476 = vmatprep.subr.mxu0 0.0
          %477 = vmatpush2.msra.mxu0 0.0
          %478 = vmatprep.subr.mxu0 0.0
          %479 = vmatpush2.msra.mxu0 0.0
          %480 = vmatprep.mubr.f32.mxu0 0.0
          %481 = vmatmul.mubr.f32.gmra.mxu0 %v414
          %v482 = vpop.f32.mrf.mxu0
          %v483 = vadd.f32 %v411, %v482
          %v484 = vpop.f32.mrf.mxu0
          %485 = vdwg.mxu0
          %486 = vxpose.xlu0.b32.start [1/16] %v403, 128
          %487 = vxpose.xlu0.b32.cont [2/16] 0.0, 128
          %488 = vxpose.xlu0.b32.cont [3/16] 0.0, 128
          %489 = vxpose.xlu0.b32.cont [4/16] 0.0, 128
          %490 = vxpose.xlu0.b32.cont [5/16] 0.0, 128
          %491 = vxpose.xlu0.b32.cont [6/16] 0.0, 128
          %492 = vxpose.xlu0.b32.cont [7/16] 0.0, 128
          %493 = vxpose.xlu0.b32.cont [8/16] 0.0, 128
          %494 = vxpose.xlu0.b32.cont [9/16] 0.0, 128
          %495 = vxpose.xlu0.b32.cont [10/16] 0.0, 128
          %496 = vxpose.xlu0.b32.cont [11/16] 0.0, 128
          %497 = vxpose.xlu0.b32.cont [12/16] 0.0, 128
          %498 = vxpose.xlu0.b32.cont [13/16] 0.0, 128
          %499 = vxpose.xlu0.b32.cont [14/16] 0.0, 128
          %500 = vxpose.xlu0.b32.cont [15/16] 0.0, 128
          %501 = vxpose.xlu0.b32.end [16/16] 0.0, 128
          %v502 = vpop.trf.xlu0
          %v503 = vpop.trf.xlu0
          %v504 = vpop.trf.xlu0
          %v505 = vpop.trf.xlu0
          %v506 = vpop.trf.xlu0
          %v507 = vpop.trf.xlu0
          %v508 = vpop.trf.xlu0
          %v509 = vpop.trf.xlu0
          %v510 = vpop.trf.xlu0
          %v511 = vpop.trf.xlu0
          %v512 = vpop.trf.xlu0
          %v513 = vpop.trf.xlu0
          %v514 = vpop.trf.xlu0
          %v515 = vpop.trf.xlu0
          %v516 = vpop.trf.xlu0
          %v517 = vpop.trf.xlu0
          %518 = vst.msk [vmem:[#allocation2] sm:$0xff] %vm328, %v502
          %519 = vst.msk [vmem:[#allocation2 + $0x8] sm:$0xff] %vm328, %v503
          %vm520 = vcmask 125952
          %521 = vst.msk [vmem:[#allocation3] sm:$0xf] %vm520, %v483
        $region56: #{tpu_custom_call.1} parent=51 // pred_fallthru
          _
        %v522 = vld [vmem:[%s315] sm:$0xf]
        %v523 = vld [vmem:[%s1] sm:$0xf]
        %v524 = vld [vmem:[%s2] sm:$0xf]
        %526 = vset.pattern.permute.xlu0 0
        %527 = vperm.xlu0 %526, %v524
        %v528 = vpop.permute.xlu0 %527
        %vm530 = vcmask 31744
        %v532 = vsel %vm530, %v523, 0
        %vm534 = vcmask 1043456
        %v536 = vsel %vm534, %v522, 0
        %538 = vmatprep.subr.mxu0 0.0
        %539 = vmatpush1.msra.mxu0 0.0
        %540 = vmatprep.subr.mxu0 0.0
        %541 = vmatpush1.msra.mxu0 0.0
        %542 = vmatprep.subr.mxu0 0.0
        %543 = vmatpush1.msra.mxu0 0.0
        %544 = vmatprep.subr.mxu0 0.0
        %545 = vmatpush1.msra.mxu0 0.0
        %546 = vmatprep.subr.mxu0 0.0
        %547 = vmatpush1.msra.mxu0 0.0
        %548 = vmatprep.subr.mxu0 0.0
        %549 = vmatpush1.msra.mxu0 0.0
        %550 = vmatprep.subr.mxu0 0.0
        %551 = vmatpush1.msra.mxu0 0.0
        %552 = vmatprep.subr.mxu0 0.0
        %553 = vmatpush1.msra.mxu0 0.0
        %554 = vmatprep.subr.mxu0 0.0
        %555 = vmatpush1.msra.mxu0 0.0
        %556 = vmatprep.subr.mxu0 0.0
        %557 = vmatpush1.msra.mxu0 0.0
        %558 = vmatprep.subr.mxu0 0.0
        %559 = vmatpush1.msra.mxu0 0.0
        %560 = vmatprep.subr.mxu0 0.0
        %561 = vmatpush1.msra.mxu0 0.0
        %562 = vmatprep.subr.mxu0 0.0
        %563 = vmatpush1.msra.mxu0 0.0
        %564 = vmatprep.subr.mxu0 0.0
        %565 = vmatpush1.msra.mxu0 0.0
        %566 = vmatprep.subr.mxu0 0.0
        %567 = vmatpush1.msra.mxu0 0.0
        %568 = vmatprep.subr.mxu0 0.0
        %569 = vmatpush1.msra.mxu0 %v536
        %570 = vmatprep.subr.mxu0 0.0
        %571 = vmatpush2.msra.mxu0 0.0
        %572 = vmatprep.subr.mxu0 0.0
        %573 = vmatpush2.msra.mxu0 0.0
        %574 = vmatprep.subr.mxu0 0.0
        %575 = vmatpush2.msra.mxu0 0.0
        %576 = vmatprep.subr.mxu0 0.0
        %577 = vmatpush2.msra.mxu0 0.0
        %578 = vmatprep.subr.mxu0 0.0
        %579 = vmatpush2.msra.mxu0 0.0
        %580 = vmatprep.subr.mxu0 0.0
        %581 = vmatpush2.msra.mxu0 0.0
        %582 = vmatprep.subr.mxu0 0.0
        %583 = vmatpush2.msra.mxu0 0.0
        %584 = vmatprep.subr.mxu0 0.0
        %585 = vmatpush2.msra.mxu0 0.0
        %586 = vmatprep.subr.mxu0 0.0
        %587 = vmatpush2.msra.mxu0 0.0
        %588 = vmatprep.subr.mxu0 0.0
        %589 = vmatpush2.msra.mxu0 0.0
        %590 = vmatprep.subr.mxu0 0.0
        %591 = vmatpush2.msra.mxu0 0.0
        %592 = vmatprep.subr.mxu0 0.0
        %593 = vmatpush2.msra.mxu0 0.0
        %594 = vmatprep.subr.mxu0 0.0
        %595 = vmatpush2.msra.mxu0 0.0
        %596 = vmatprep.subr.mxu0 0.0
        %597 = vmatpush2.msra.mxu0 0.0
        %598 = vmatprep.subr.mxu0 0.0
        %599 = vmatpush2.msra.mxu0 0.0
        %600 = vmatprep.subr.mxu0 0.0
        %601 = vmatpush2.msra.mxu0 0.0
        %602 = vmatprep.mubr.f32.mxu0 0.0
        %603 = vmatmul.mubr.f32.gmra.mxu0 %v532
        %v604 = vpop.f32.mrf.mxu0
        %v605 = vadd.f32 %v528, %v604
        %v606 = vpop.f32.mrf.mxu0
        %607 = vdwg.mxu0
        %v608 = vld [vmem:[#allocation2] sm:$0xff]
        %v609 = vld [vmem:[#allocation2 + $0x8] sm:$0xff]
        %v610 = vld [vmem:[#allocation3] sm:$0xf]
        %v612 = vsel %vm530, %v608, 0
        %v615 = vsel %vm530, %v609, 0
        %v618 = vsel %vm534, %v605, 0
        %620 = vmatprep.subr.mxu0 0.0
        %621 = vmatpush1.msra.mxu0 0.0
        %622 = vmatprep.subr.mxu0 0.0
        %623 = vmatpush1.msra.mxu0 0.0
        %624 = vmatprep.subr.mxu0 0.0
        %625 = vmatpush1.msra.mxu0 0.0
        %626 = vmatprep.subr.mxu0 0.0
        %627 = vmatpush1.msra.mxu0 0.0
        %628 = vmatprep.subr.mxu0 0.0
        %629 = vmatpush1.msra.mxu0 0.0
        %630 = vmatprep.subr.mxu0 0.0
        %631 = vmatpush1.msra.mxu0 0.0
        %632 = vmatprep.subr.mxu0 0.0
        %633 = vmatpush1.msra.mxu0 0.0
        %634 = vmatprep.subr.mxu0 0.0
        %635 = vmatpush1.msra.mxu0 0.0
        %636 = vmatprep.subr.mxu0 0.0
        %637 = vmatpush1.msra.mxu0 0.0
        %638 = vmatprep.subr.mxu0 0.0
        %639 = vmatpush1.msra.mxu0 0.0
        %640 = vmatprep.subr.mxu0 0.0
        %641 = vmatpush1.msra.mxu0 0.0
        %642 = vmatprep.subr.mxu0 0.0
        %643 = vmatpush1.msra.mxu0 0.0
        %644 = vmatprep.subr.mxu0 0.0
        %645 = vmatpush1.msra.mxu0 0.0
        %646 = vmatprep.subr.mxu0 0.0
        %647 = vmatpush1.msra.mxu0 0.0
        %648 = vmatprep.subr.mxu0 0.0
        %649 = vmatpush1.msra.mxu0 0.0
        %650 = vmatprep.subr.mxu0 0.0
        %651 = vmatpush1.msra.mxu0 %v618
        %652 = vmatprep.subr.mxu0 0.0
        %653 = vmatpush2.msra.mxu0 0.0
        %654 = vmatprep.subr.mxu0 0.0
        %655 = vmatpush2.msra.mxu0 0.0
        %656 = vmatprep.subr.mxu0 0.0
        %657 = vmatpush2.msra.mxu0 0.0
        %658 = vmatprep.subr.mxu0 0.0
        %659 = vmatpush2.msra.mxu0 0.0
        %660 = vmatprep.subr.mxu0 0.0
        %661 = vmatpush2.msra.mxu0 0.0
        %662 = vmatprep.subr.mxu0 0.0
        %663 = vmatpush2.msra.mxu0 0.0
        %664 = vmatprep.subr.mxu0 0.0
        %665 = vmatpush2.msra.mxu0 0.0
        %666 = vmatprep.subr.mxu0 0.0
        %667 = vmatpush2.msra.mxu0 0.0
        %668 = vmatprep.subr.mxu0 0.0
        %669 = vmatpush2.msra.mxu0 0.0
        %670 = vmatprep.subr.mxu0 0.0
        %671 = vmatpush2.msra.mxu0 0.0
        %672 = vmatprep.subr.mxu0 0.0
        %673 = vmatpush2.msra.mxu0 0.0
        %674 = vmatprep.subr.mxu0 0.0
        %675 = vmatpush2.msra.mxu0 0.0
        %676 = vmatprep.subr.mxu0 0.0
        %677 = vmatpush2.msra.mxu0 0.0
        %678 = vmatprep.subr.mxu0 0.0
        %679 = vmatpush2.msra.mxu0 0.0
        %680 = vmatprep.subr.mxu0 0.0
        %681 = vmatpush2.msra.mxu0 0.0
        %682 = vmatprep.subr.mxu0 0.0
        %683 = vmatpush2.msra.mxu0 0.0
        %684 = vmatprep.mubr.f32.mxu0 0.0
        %685 = vmatmul.mubr.f32.gmra.mxu0 %v612
        %v686 = vpop.f32.mrf.mxu0
        %v687 = vadd.f32 0.0, %v686
        %v688 = vpop.f32.mrf.mxu0
        %689 = vmatprep.mubr.f32.mxu0 0.0
        %690 = vmatmul.mubr.f32.gmra.mxu0 %v615
        %v691 = vpop.f32.mrf.mxu0
        %v692 = vadd.f32 0.0, %v691
        %v693 = vpop.f32.mrf.mxu0
        %694 = vdwg.mxu0
        %v695 = vmul.f32 %v687, 0.5
        %v696 = vmul.f32 %v692, 0.5
        %v697 = vand.u32 2147483647, %v695
        %v698 = vand.u32 2147483647, %v696
        %vm699 = vcmp.lt.f32.partialorder %v697, inf
        %vm700 = vcmp.lt.f32.partialorder %v698, inf
        %v701 = vsel %vm699, %v695, 0.0
        %v702 = vsel %vm700, %v696, 0.0
        %vm703 = vcmask 130048
        %v704 = vsel %vm703, %v701, -inf
        %v705 = vsel %vm703, %v702, -inf
        %v706 = vmax.f32 %v704, %v705
        %v707 = vrot.slane %v706, 4
        %v708 = vmax.f32 %v706, %v707
        %v709 = vrot.slane %v708, 2
        %v710 = vmax.f32 %v708, %v709
        %v711 = vrot.slane %v710, 1
        %v712 = vmax.f32 %v710, %v711
        %v713 = vsub.f32 -inf, %v712
        %v714 = vmul.f32 %v713, 1.442695
        %v715 = vpow.pop %v714
        %v716 = vsub.f32 %v701, %v712
        %v717 = vsub.f32 %v702, %v712
        %v718 = vmul.f32 %v716, 1.442695
        %v719 = vpow.pop %v718
        %v720 = vmul.f32 %v717, 1.442695
        %v721 = vpow.pop %v720
        %v722 = vmul.f32 %v715, 0.0
        %v723 = vsel %vm703, %v719, 0.0
        %v724 = vsel %vm703, %v721, 0.0
        %v725 = vadd.f32 %v723, %v724
        %v726 = vrot.slane %v725, 4
        %v727 = vadd.f32 %v725, %v726
        %v728 = vrot.slane %v727, 2
        %v729 = vadd.f32 %v727, %v728
        %v730 = vrot.slane %v729, 1
        %v731 = vadd.f32 %v729, %v730
        %v732 = vadd.f32 %v722, %v731
        %v734 = vsel %vm703, %v610, 0
        %736 = vmatprep.subr.mxu0 0.0
        %737 = vmatpush1.msra.mxu0 0.0
        %738 = vmatprep.subr.mxu0 0.0
        %739 = vmatpush1.msra.mxu0 0.0
        %740 = vmatprep.subr.mxu0 0.0
        %741 = vmatpush1.msra.mxu0 0.0
        %742 = vmatprep.subr.mxu0 0.0
        %743 = vmatpush1.msra.mxu0 0.0
        %744 = vmatprep.subr.mxu0 0.0
        %745 = vmatpush1.msra.mxu0 0.0
        %746 = vmatprep.subr.mxu0 0.0
        %747 = vmatpush1.msra.mxu0 0.0
        %748 = vmatprep.subr.mxu0 0.0
        %749 = vmatpush1.msra.mxu0 0.0
        %750 = vmatprep.subr.mxu0 0.0
        %751 = vmatpush1.msra.mxu0 0.0
        %752 = vmatprep.subr.mxu0 0.0
        %753 = vmatpush1.msra.mxu0 0.0
        %754 = vmatprep.subr.mxu0 0.0
        %755 = vmatpush1.msra.mxu0 0.0
        %756 = vmatprep.subr.mxu0 0.0
        %757 = vmatpush1.msra.mxu0 0.0
        %758 = vmatprep.subr.mxu0 0.0
        %759 = vmatpush1.msra.mxu0 0.0
        %760 = vmatprep.subr.mxu0 0.0
        %761 = vmatpush1.msra.mxu0 0.0
        %762 = vmatprep.subr.mxu0 0.0
        %763 = vmatpush1.msra.mxu0 0.0
        %764 = vmatprep.subr.mxu0 0.0
        %765 = vmatpush1.msra.mxu0 %v721
        %766 = vmatprep.subr.mxu0 0.0
        %767 = vmatpush1.msra.mxu0 %v719
        %768 = vmatprep.subr.mxu0 0.0
        %769 = vmatpush2.msra.mxu0 0.0
        %770 = vmatprep.subr.mxu0 0.0
        %771 = vmatpush2.msra.mxu0 0.0
        %772 = vmatprep.subr.mxu0 0.0
        %773 = vmatpush2.msra.mxu0 0.0
        %774 = vmatprep.subr.mxu0 0.0
        %775 = vmatpush2.msra.mxu0 0.0
        %776 = vmatprep.subr.mxu0 0.0
        %777 = vmatpush2.msra.mxu0 0.0
        %778 = vmatprep.subr.mxu0 0.0
        %779 = vmatpush2.msra.mxu0 0.0
        %780 = vmatprep.subr.mxu0 0.0
        %781 = vmatpush2.msra.mxu0 0.0
        %782 = vmatprep.subr.mxu0 0.0
        %783 = vmatpush2.msra.mxu0 0.0
        %784 = vmatprep.subr.mxu0 0.0
        %785 = vmatpush2.msra.mxu0 0.0
        %786 = vmatprep.subr.mxu0 0.0
        %787 = vmatpush2.msra.mxu0 0.0
        %788 = vmatprep.subr.mxu0 0.0
        %789 = vmatpush2.msra.mxu0 0.0
        %790 = vmatprep.subr.mxu0 0.0
        %791 = vmatpush2.msra.mxu0 0.0
        %792 = vmatprep.subr.mxu0 0.0
        %793 = vmatpush2.msra.mxu0 0.0
        %794 = vmatprep.subr.mxu0 0.0
        %795 = vmatpush2.msra.mxu0 0.0
        %796 = vmatprep.subr.mxu0 0.0
        %797 = vmatpush2.msra.mxu0 0.0
        %798 = vmatprep.subr.mxu0 0.0
        %799 = vmatpush2.msra.mxu0 0.0
        %800 = vmatprep.mubr.f32.mxu0 0.0
        %801 = vmatmul.mubr.f32.gmra.mxu0 %v734
        %v802 = vpop.f32.mrf.mxu0
        %v803 = vadd.f32 0.0, %v802
        %v804 = vpop.f32.mrf.mxu0
        %805 = vdwg.mxu0
        %v806 = vadd.f32 %v722, %v803
        %v807 = vadd.f32 %v732, 1e-10
        %v808 = vrcp.pop %v807
        %v809 = vmul.f32 %v806, %v808
        %s810 = sld [smem:[#allocation4]]
        %v811 = vstv %s810
        %v812 = vmul.f32 %v811, %v809
        %v813 = vadd.f32 %v812, %v522
        %vm814 = vcmask 125952
        %815 = vst.msk [vmem:[%s311] sm:$0xf] %vm814, %v813
        %s816 = sand.u32 %s218, 1
        %s817 = scalar_lea.sflag [#allocation6], %s816
        %s818 = sand.u32 %s218, 1
        %s819 = smul.addr %s818, 4
        %s820 = scalar_lea.vmem [#allocation5], %s819
        // Predicated region
        $region57: #{tpu_custom_call.1} parent=51 // pred_check
          %p821 = pneg %p228
        $region58: #{tpu_custom_call.1} parent=51 // pred_check_branch
          %823 = sbr.rel (%p821) target = $region60
        $region59: #{tpu_custom_call.1} parent=51 // pred_region
          %s825 = ssub.s32 64, 64
          %826 = vsyncadd %s817, %s825
          %s827 = sadd.s32 %s28, %s27
          %s828 = smul.addr %s827, 64
          %s829 = scalar_lea.hbm %s8, %s828
          %s831 = sshll.u32 %s820, 4
          %s832 = int_to_ptr.vmem [resolvable:$true] %s831
          %834 = dma.vmem_to_hbm [thread:$0]  %s832, 64, %s829, %s817
        $region60: #{tpu_custom_call.1} parent=51 // pred_fallthru
          _
      $region52: #{tpu_custom_call.1} parent=5 // pred_fallthru
        _
      %p835 = scmp.le.s32.totalorder 2, %s18
      // Predicated region
      $region61: #{tpu_custom_call.1} parent=5 // pred_check
        %p836 = pneg %p835
      $region62: #{tpu_custom_call.1} parent=5 // pred_check_branch
        %838 = sbr.rel (%p836) target = $region64
      $region63: #{tpu_custom_call.1} parent=5 // pred_region
        %s839 = ssub.s32 %s18, 2
        // Predicated region
        $region65: #{tpu_custom_call.1} parent=63 // pred_check
          %p840 = pneg %p234
        $region66: #{tpu_custom_call.1} parent=63 // pred_check_branch
          %842 = sbr.rel (%p840) target = $region68
        $region67: #{tpu_custom_call.1} parent=63 // pred_region
          %s843 = sand.u32 %s219, 1
          %s844 = scalar_lea.sflag [#allocation6], %s843
          %s845 = sand.u32 %s219, 1
          %s846 = smul.addr %s845, 4
          %s847 = scalar_lea.vmem [#allocation5], %s846
          %848 = dma.done %s844, 64
        $region68: #{tpu_custom_call.1} parent=63 // pred_fallthru
          _
      $region64: #{tpu_custom_call.1} parent=5 // pred_fallthru
        _
    $region6: #{tpu_custom_call.1} parent=1 // loop_footer
      %s22 = sadd.s32 1, %s18
    $region7: #{tpu_custom_call.1} parent=1 // loop_footer_branch
      %17 = sbr.rel target = $region3
    $region8: #{tpu_custom_call.1} parent=1 // loop_exit
      _
    %849 = vsyncpa [#allocation6], 1
    %s850 = scalar_lea.sflag [#allocation6], 1
    %851 = vsyncpa %s850, 1

</llo_original>
